<compile_context>
chip_gen: v7x
topology: tpu7x:2x2x1
jax: 0.10.0
libtpu: 0.0.40
codegen_flags: <defaults>
</compile_context>

<pallas_src>
import functools

import jax
import jax.numpy as jnp
from jax import lax
from jax.experimental import pallas as pl
from jax.experimental.pallas import tpu as pltpu

P_DROP = 0.2
N_DROPOUT_LAYERS = 3

K_IN, HID, N_OUT = 28 * 28, 100, 10
K_PAD, H_PAD, O_PAD = 896, 128, 128          # lane-aligned padded sizes


def _round_up(n, m):
    return ((n + m - 1) // m) * m


def _pad2(a, rows, cols):
    out = jnp.zeros((rows, cols), a.dtype)
    return out.at[: a.shape[0], : a.shape[1]].set(a)


def _dropout(h, layer_id, seed, row0, p, training):
    """Inverted dropout matching torch.nn.Dropout(p) train-mode semantics.

    Mask = hash(seed, layer, global_row, col) >= p, scaled by 1/(1-p).
    (Does not bit-match torch's RNG stream, which is expected.)
    """
    if not training:
        return h
    tb, hw = h.shape
    rows = lax.broadcasted_iota(jnp.int32, (tb, hw), 0) + row0
    cols = lax.broadcasted_iota(jnp.int32, (tb, hw), 1)
    x = rows * jnp.int32(hw * N_DROPOUT_LAYERS) + cols * jnp.int32(N_DROPOUT_LAYERS)
    x = x + jnp.int32(layer_id)
    x = x + seed * jnp.int32(-1640531535)            # 0x9E3779B1 (golden ratio)
    # lowbias32-style finalizer; ((v >> k) & mask) == logical right shift.
    x = x ^ ((x >> 16) & 0xFFFF)
    x = x * jnp.int32(0x7FEB352D)
    x = x ^ ((x >> 15) & 0x1FFFF)
    x = x * jnp.int32(-2073319797)                   # 0x846CA68B
    x = x ^ ((x >> 16) & 0xFFFF)
    bits24 = (x >> 7) & 0x00FFFFFF                   # 24 uniform bits
    keep = (bits24 >= jnp.int32(int(p * (1 << 24)))).astype(jnp.float32)
    return h * (keep * jnp.float32(1.0 / (1.0 - p)))


def mlp_dropout_kernel(seed_ref,                      # SMEM (1,) int32 (prefetch)
                       x_ref,                         # (TB, 896) bf16
                       w1_ref, b1_ref,                # (896,128) bf16, (1,128) f32
                       w2_ref, b2_ref,                # (128,128) bf16, (1,128) f32
                       w3_ref, b3_ref,                # (128,128) bf16, (1,128) f32
                       w4_ref, b4_ref,                # (128,128) bf16, (1,128) f32
                       o_ref,                         # (TB, 128) f32
                       *, training, p):
    tb = x_ref.shape[0]
    row0 = pl.program_id(0) * tb
    seed = seed_ref[0]

    h = jnp.dot(x_ref[...], w1_ref[...], preferred_element_type=jnp.float32) + b1_ref[...]
    h = jnp.maximum(h, 0.0)
    h = _dropout(h, 0, seed, row0, p, training)

    h = jnp.dot(h.astype(jnp.bfloat16), w2_ref[...],
                preferred_element_type=jnp.float32) + b2_ref[...]
    h = jnp.maximum(h, 0.0)
    h = _dropout(h, 1, seed, row0, p, training)

    h = jnp.dot(h.astype(jnp.bfloat16), w3_ref[...],
                preferred_element_type=jnp.float32) + b3_ref[...]
    h = jnp.maximum(h, 0.0)
    h = _dropout(h, 2, seed, row0, p, training)

    out = jnp.dot(h.astype(jnp.bfloat16), w4_ref[...],
                  preferred_element_type=jnp.float32) + b4_ref[...]
    o_ref[...] = out.astype(o_ref.dtype)


def init_params(key):
    """torch.nn.Linear-style init; weights stored (in_features, out_features)."""
    dims = [(K_IN, HID), (HID, HID), (HID, HID), (HID, N_OUT)]
    params = []
    for fan_in, fan_out in dims:
        key, kw, kb = jax.random.split(key, 3)
        bound = 1.0 / (fan_in ** 0.5)
        w = jax.random.uniform(kw, (fan_in, fan_out), jnp.float32, -bound, bound)
        b = jax.random.uniform(kb, (1, fan_out), jnp.float32, -bound, bound)
        params.append((w, b))
    return params


def mlp_dropout_forward(x, params, seed=0, training=True, block_rows=512):
    B = x.shape[0]
    x2 = x.reshape(B, -1).astype(jnp.float32)        # like torch .view(bsize, -1)
    assert x2.shape[1] == K_IN

    # batch tile: multiple of 8 sublanes, capped at block_rows (VMEM-safe on v7x).
    tb = min(block_rows, _round_up(B, 8))
    b_pad = _round_up(B, tb)
    grid = (b_pad // tb,)

    xp = jnp.zeros((b_pad, K_PAD), jnp.bfloat16).at[:B, :K_IN].set(
        x2.astype(jnp.bfloat16))

    (w1, b1), (w2, b2), (w3, b3), (w4, b4) = params
    w1p = _pad2(w1.astype(jnp.bfloat16), K_PAD, H_PAD)
    w2p = _pad2(w2.astype(jnp.bfloat16), H_PAD, H_PAD)
    w3p = _pad2(w3.astype(jnp.bfloat16), H_PAD, H_PAD)
    w4p = _pad2(w4.astype(jnp.bfloat16), H_PAD, O_PAD)
    b1p = _pad2(b1, 1, H_PAD)
    b2p = _pad2(b2, 1, H_PAD)
    b3p = _pad2(b3, 1, H_PAD)
    b4p = _pad2(b4, 1, O_PAD)

    seed_arr = jnp.array([seed], dtype=jnp.int32)

    def resident(shape):
        return pl.BlockSpec(shape, lambda i, s: (0, 0))

    grid_spec = pltpu.PrefetchScalarGridSpec(
        num_scalar_prefetch=1,
        grid=grid,
        in_specs=[
            pl.BlockSpec((tb, K_PAD), lambda i, s: (i, 0)),
            resident((K_PAD, H_PAD)), resident((1, H_PAD)),
            resident((H_PAD, H_PAD)), resident((1, H_PAD)),
            resident((H_PAD, H_PAD)), resident((1, H_PAD)),
            resident((H_PAD, O_PAD)), resident((1, O_PAD)),
        ],
        out_specs=pl.BlockSpec((tb, O_PAD), lambda i, s: (i, 0)),
    )

    kernel = functools.partial(mlp_dropout_kernel, training=training, p=P_DROP)

    out = pl.pallas_call(
        kernel,
        out_shape=jax.ShapeDtypeStruct((b_pad, O_PAD), jnp.float32),
        grid_spec=grid_spec,
        compiler_params=pltpu.CompilerParams(
            dimension_semantics=("parallel",)),
    )(seed_arr, xp, w1p, b1p, w2p, b2p, w3p, b3p, w4p, b4p)

    return out[:B, :N_OUT]


def _ref_eval(x, params):
    """Pure-JAX eval-mode reference using the same bf16-matmul/f32-accum math."""
    h = x.reshape(x.shape[0], -1).astype(jnp.bfloat16)
    (w1, b1), (w2, b2), (w3, b3), (w4, b4) = params
    for w, b in ((w1, b1), (w2, b2), (w3, b3)):
        h = jnp.dot(h, w.astype(jnp.bfloat16),
                    preferred_element_type=jnp.float32) + b
        h = jnp.maximum(h, 0.0).astype(jnp.bfloat16)
    return jnp.dot(h, w4.astype(jnp.bfloat16),
                   preferred_element_type=jnp.float32) + b4


if __name__ == "__main__":
    key = jax.random.PRNGKey(0)
    key_p, key_x = jax.random.split(key)

    params = init_params(key_p)
    # MNIST-like NCHW input: (batch=2, channels=1, 28, 28)
    x = jax.random.normal(key_x, (2, 1, 28, 28), dtype=jnp.float32)

    # training=True exercises the in-kernel dropout path (module default mode).
    out_train = jax.block_until_ready(
        mlp_dropout_forward(x, params, seed=123, training=True))
    # eval mode (dropout = identity) must match the pure-JAX reference.
    out_eval = jax.block_until_ready(
        mlp_dropout_forward(x, params, seed=0, training=False))

    assert out_train.shape == (2, 10) and out_eval.shape == (2, 10)
    assert bool(jnp.isfinite(out_train).all())

    ref = _ref_eval(x, params)
    assert jnp.allclose(out_eval, ref, atol=1e-2, rtol=1e-2)

    print("KERNEL_OK")
</pallas_src>

<mosaic_0001>
module attributes {stable_mosaic.version = 11 : i64} {
  func.func @mlp_dropout_kernel(%arg0: i32, %arg1: memref<1xi32, #tpu.memory_space<smem>>, %arg2: memref<8x896xbf16, #tpu.memory_space<vmem>>, %arg3: memref<896x128xbf16, #tpu.memory_space<vmem>>, %arg4: memref<1x128xf32, #tpu.memory_space<vmem>>, %arg5: memref<128x128xbf16, #tpu.memory_space<vmem>>, %arg6: memref<1x128xf32, #tpu.memory_space<vmem>>, %arg7: memref<128x128xbf16, #tpu.memory_space<vmem>>, %arg8: memref<1x128xf32, #tpu.memory_space<vmem>>, %arg9: memref<128x128xbf16, #tpu.memory_space<vmem>>, %arg10: memref<1x128xf32, #tpu.memory_space<vmem>>, %arg11: memref<8x128xf32, #tpu.memory_space<vmem>>) attributes {dimension_semantics = [#tpu.dimension_semantics<parallel>], iteration_bounds = array<i64: 1>, scalar_prefetch = 1 : i64, scratch_operands = 0 : i64, tpu.core_type = #tpu.core_type<tc>, window_params = [{transform_indices = @transform_0, window_bounds = array<i64: 8, 896>}, {pipeline_mode = #tpu.pipeline_mode<synchronous>, transform_indices = @transform_1, window_bounds = array<i64: 896, 128>}, {pipeline_mode = #tpu.pipeline_mode<synchronous>, transform_indices = @transform_2, window_bounds = array<i64: 1, 128>}, {pipeline_mode = #tpu.pipeline_mode<synchronous>, transform_indices = @transform_3, window_bounds = array<i64: 128, 128>}, {pipeline_mode = #tpu.pipeline_mode<synchronous>, transform_indices = @transform_4, window_bounds = array<i64: 1, 128>}, {pipeline_mode = #tpu.pipeline_mode<synchronous>, transform_indices = @transform_5, window_bounds = array<i64: 128, 128>}, {pipeline_mode = #tpu.pipeline_mode<synchronous>, transform_indices = @transform_6, window_bounds = array<i64: 1, 128>}, {pipeline_mode = #tpu.pipeline_mode<synchronous>, transform_indices = @transform_7, window_bounds = array<i64: 128, 128>}, {pipeline_mode = #tpu.pipeline_mode<synchronous>, transform_indices = @transform_8, window_bounds = array<i64: 1, 128>}, {transform_indices = @transform_9, window_bounds = array<i64: 8, 128>}]} {
    %c8_i32 = arith.constant 8 : i32
    %0 = arith.muli %arg0, %c8_i32 : i32
    %c0 = arith.constant 0 : index
    %1 = memref.load %arg1[%c0] : memref<1xi32, #tpu.memory_space<smem>>
    %c0_0 = arith.constant 0 : index
    %c0_1 = arith.constant 0 : index
    %2 = vector.load %arg2[%c0_0, %c0_1] : memref<8x896xbf16, #tpu.memory_space<vmem>>, vector<8x896xbf16>
    %c0_2 = arith.constant 0 : index
    %c0_3 = arith.constant 0 : index
    %3 = vector.load %arg3[%c0_2, %c0_3] : memref<896x128xbf16, #tpu.memory_space<vmem>>, vector<896x128xbf16>
    %cst = arith.constant dense<0.000000e+00> : vector<8x128xf32>
    %4 = tpu.matmul %2, %3, %cst {dimension_numbers = #tpu.dot_dimension_numbers<[1], [0], [0], [1], [0, 0, 1, 1], [], []>} : vector<8x896xbf16>, vector<896x128xbf16>, vector<8x128xf32> -> vector<8x128xf32>
    %c0_4 = arith.constant 0 : index
    %c0_5 = arith.constant 0 : index
    %5 = vector.load %arg4[%c0_4, %c0_5] : memref<1x128xf32, #tpu.memory_space<vmem>>, vector<1x128xf32>
    %6 = vector.broadcast %5 : vector<1x128xf32> to vector<8x128xf32>
    %7 = arith.addf %4, %6 : vector<8x128xf32>
    %cst_6 = arith.constant 0.000000e+00 : f32
    %8 = vector.broadcast %cst_6 : f32 to vector<8x128xf32>
    %9 = arith.maximumf %7, %8 : vector<8x128xf32>
    %10 = tpu.iota {dimensions = array<i32: 0>} : vector<8x128xi32>
    %11 = vector.broadcast %0 : i32 to vector<8x128xi32>
    %12 = arith.addi %10, %11 : vector<8x128xi32>
    %13 = tpu.iota {dimensions = array<i32: 1>} : vector<8x128xi32>
    %c384_i32 = arith.constant 384 : i32
    %14 = vector.broadcast %c384_i32 : i32 to vector<8x128xi32>
    %15 = arith.muli %12, %14 : vector<8x128xi32>
    %c3_i32 = arith.constant 3 : i32
    %16 = vector.broadcast %c3_i32 : i32 to vector<8x128xi32>
    %17 = arith.muli %13, %16 : vector<8x128xi32>
    %18 = arith.addi %15, %17 : vector<8x128xi32>
    %c0_i32 = arith.constant 0 : i32
    %19 = vector.broadcast %c0_i32 : i32 to vector<8x128xi32>
    %20 = arith.addi %18, %19 : vector<8x128xi32>
    %c-1640531535_i32 = arith.constant -1640531535 : i32
    %21 = arith.muli %1, %c-1640531535_i32 : i32
    %22 = vector.broadcast %21 : i32 to vector<8x128xi32>
    %23 = arith.addi %20, %22 : vector<8x128xi32>
    %c16_i32 = arith.constant 16 : i32
    %24 = vector.broadcast %c16_i32 : i32 to vector<8x128xi32>
    %25 = arith.shrsi %23, %24 : vector<8x128xi32>
    %c65535_i32 = arith.constant 65535 : i32
    %26 = vector.broadcast %c65535_i32 : i32 to vector<8x128xi32>
    %27 = arith.andi %25, %26 : vector<8x128xi32>
    %28 = arith.xori %23, %27 : vector<8x128xi32>
    %c2146121005_i32 = arith.constant 2146121005 : i32
    %29 = vector.broadcast %c2146121005_i32 : i32 to vector<8x128xi32>
    %30 = arith.muli %28, %29 : vector<8x128xi32>
    %c15_i32 = arith.constant 15 : i32
    %31 = vector.broadcast %c15_i32 : i32 to vector<8x128xi32>
    %32 = arith.shrsi %30, %31 : vector<8x128xi32>
    %c131071_i32 = arith.constant 131071 : i32
    %33 = vector.broadcast %c131071_i32 : i32 to vector<8x128xi32>
    %34 = arith.andi %32, %33 : vector<8x128xi32>
    %35 = arith.xori %30, %34 : vector<8x128xi32>
    %c-2073319797_i32 = arith.constant -2073319797 : i32
    %36 = vector.broadcast %c-2073319797_i32 : i32 to vector<8x128xi32>
    %37 = arith.muli %35, %36 : vector<8x128xi32>
    %c16_i32_7 = arith.constant 16 : i32
    %38 = vector.broadcast %c16_i32_7 : i32 to vector<8x128xi32>
    %39 = arith.shrsi %37, %38 : vector<8x128xi32>
    %c65535_i32_8 = arith.constant 65535 : i32
    %40 = vector.broadcast %c65535_i32_8 : i32 to vector<8x128xi32>
    %41 = arith.andi %39, %40 : vector<8x128xi32>
    %42 = arith.xori %37, %41 : vector<8x128xi32>
    %c7_i32 = arith.constant 7 : i32
    %43 = vector.broadcast %c7_i32 : i32 to vector<8x128xi32>
    %44 = arith.shrsi %42, %43 : vector<8x128xi32>
    %c16777215_i32 = arith.constant 16777215 : i32
    %45 = vector.broadcast %c16777215_i32 : i32 to vector<8x128xi32>
    %46 = arith.andi %44, %45 : vector<8x128xi32>
    %c3355443_i32 = arith.constant 3355443 : i32
    %47 = vector.broadcast %c3355443_i32 : i32 to vector<8x128xi32>
    %48 = arith.cmpi sge, %46, %47 : vector<8x128xi32>
    %49 = arith.extui %48 : vector<8x128xi1> to vector<8x128xi32>
    %50 = arith.sitofp %49 : vector<8x128xi32> to vector<8x128xf32>
    %cst_9 = arith.constant 1.250000e+00 : f32
    %51 = vector.broadcast %cst_9 : f32 to vector<8x128xf32>
    %52 = arith.mulf %50, %51 : vector<8x128xf32>
    %53 = arith.mulf %9, %52 : vector<8x128xf32>
    %54 = arith.truncf %53 : vector<8x128xf32> to vector<8x128xbf16>
    %c0_10 = arith.constant 0 : index
    %c0_11 = arith.constant 0 : index
    %55 = vector.load %arg5[%c0_10, %c0_11] : memref<128x128xbf16, #tpu.memory_space<vmem>>, vector<128x128xbf16>
    %cst_12 = arith.constant dense<0.000000e+00> : vector<8x128xf32>
    %56 = tpu.matmul %54, %55, %cst_12 {dimension_numbers = #tpu.dot_dimension_numbers<[1], [0], [0], [1], [0, 0, 1, 1], [], []>} : vector<8x128xbf16>, vector<128x128xbf16>, vector<8x128xf32> -> vector<8x128xf32>
    %c0_13 = arith.constant 0 : index
    %c0_14 = arith.constant 0 : index
    %57 = vector.load %arg6[%c0_13, %c0_14] : memref<1x128xf32, #tpu.memory_space<vmem>>, vector<1x128xf32>
    %58 = vector.broadcast %57 : vector<1x128xf32> to vector<8x128xf32>
    %59 = arith.addf %56, %58 : vector<8x128xf32>
    %cst_15 = arith.constant 0.000000e+00 : f32
    %60 = vector.broadcast %cst_15 : f32 to vector<8x128xf32>
    %61 = arith.maximumf %59, %60 : vector<8x128xf32>
    %62 = tpu.iota {dimensions = array<i32: 0>} : vector<8x128xi32>
    %63 = vector.broadcast %0 : i32 to vector<8x128xi32>
    %64 = arith.addi %62, %63 : vector<8x128xi32>
    %65 = tpu.iota {dimensions = array<i32: 1>} : vector<8x128xi32>
    %c384_i32_16 = arith.constant 384 : i32
    %66 = vector.broadcast %c384_i32_16 : i32 to vector<8x128xi32>
    %67 = arith.muli %64, %66 : vector<8x128xi32>
    %c3_i32_17 = arith.constant 3 : i32
    %68 = vector.broadcast %c3_i32_17 : i32 to vector<8x128xi32>
    %69 = arith.muli %65, %68 : vector<8x128xi32>
    %70 = arith.addi %67, %69 : vector<8x128xi32>
    %c1_i32 = arith.constant 1 : i32
    %71 = vector.broadcast %c1_i32 : i32 to vector<8x128xi32>
    %72 = arith.addi %70, %71 : vector<8x128xi32>
    %c-1640531535_i32_18 = arith.constant -1640531535 : i32
    %73 = arith.muli %1, %c-1640531535_i32_18 : i32
    %74 = vector.broadcast %73 : i32 to vector<8x128xi32>
    %75 = arith.addi %72, %74 : vector<8x128xi32>
    %c16_i32_19 = arith.constant 16 : i32
    %76 = vector.broadcast %c16_i32_19 : i32 to vector<8x128xi32>
    %77 = arith.shrsi %75, %76 : vector<8x128xi32>
    %c65535_i32_20 = arith.constant 65535 : i32
    %78 = vector.broadcast %c65535_i32_20 : i32 to vector<8x128xi32>
    %79 = arith.andi %77, %78 : vector<8x128xi32>
    %80 = arith.xori %75, %79 : vector<8x128xi32>
    %c2146121005_i32_21 = arith.constant 2146121005 : i32
    %81 = vector.broadcast %c2146121005_i32_21 : i32 to vector<8x128xi32>
    %82 = arith.muli %80, %81 : vector<8x128xi32>
    %c15_i32_22 = arith.constant 15 : i32
    %83 = vector.broadcast %c15_i32_22 : i32 to vector<8x128xi32>
    %84 = arith.shrsi %82, %83 : vector<8x128xi32>
    %c131071_i32_23 = arith.constant 131071 : i32
    %85 = vector.broadcast %c131071_i32_23 : i32 to vector<8x128xi32>
    %86 = arith.andi %84, %85 : vector<8x128xi32>
    %87 = arith.xori %82, %86 : vector<8x128xi32>
    %c-2073319797_i32_24 = arith.constant -2073319797 : i32
    %88 = vector.broadcast %c-2073319797_i32_24 : i32 to vector<8x128xi32>
    %89 = arith.muli %87, %88 : vector<8x128xi32>
    %c16_i32_25 = arith.constant 16 : i32
    %90 = vector.broadcast %c16_i32_25 : i32 to vector<8x128xi32>
    %91 = arith.shrsi %89, %90 : vector<8x128xi32>
    %c65535_i32_26 = arith.constant 65535 : i32
    %92 = vector.broadcast %c65535_i32_26 : i32 to vector<8x128xi32>
    %93 = arith.andi %91, %92 : vector<8x128xi32>
    %94 = arith.xori %89, %93 : vector<8x128xi32>
    %c7_i32_27 = arith.constant 7 : i32
    %95 = vector.broadcast %c7_i32_27 : i32 to vector<8x128xi32>
    %96 = arith.shrsi %94, %95 : vector<8x128xi32>
    %c16777215_i32_28 = arith.constant 16777215 : i32
    %97 = vector.broadcast %c16777215_i32_28 : i32 to vector<8x128xi32>
    %98 = arith.andi %96, %97 : vector<8x128xi32>
    %c3355443_i32_29 = arith.constant 3355443 : i32
    %99 = vector.broadcast %c3355443_i32_29 : i32 to vector<8x128xi32>
    %100 = arith.cmpi sge, %98, %99 : vector<8x128xi32>
    %101 = arith.extui %100 : vector<8x128xi1> to vector<8x128xi32>
    %102 = arith.sitofp %101 : vector<8x128xi32> to vector<8x128xf32>
    %cst_30 = arith.constant 1.250000e+00 : f32
    %103 = vector.broadcast %cst_30 : f32 to vector<8x128xf32>
    %104 = arith.mulf %102, %103 : vector<8x128xf32>
    %105 = arith.mulf %61, %104 : vector<8x128xf32>
    %106 = arith.truncf %105 : vector<8x128xf32> to vector<8x128xbf16>
    %c0_31 = arith.constant 0 : index
    %c0_32 = arith.constant 0 : index
    %107 = vector.load %arg7[%c0_31, %c0_32] : memref<128x128xbf16, #tpu.memory_space<vmem>>, vector<128x128xbf16>
    %cst_33 = arith.constant dense<0.000000e+00> : vector<8x128xf32>
    %108 = tpu.matmul %106, %107, %cst_33 {dimension_numbers = #tpu.dot_dimension_numbers<[1], [0], [0], [1], [0, 0, 1, 1], [], []>} : vector<8x128xbf16>, vector<128x128xbf16>, vector<8x128xf32> -> vector<8x128xf32>
    %c0_34 = arith.constant 0 : index
    %c0_35 = arith.constant 0 : index
    %109 = vector.load %arg8[%c0_34, %c0_35] : memref<1x128xf32, #tpu.memory_space<vmem>>, vector<1x128xf32>
    %110 = vector.broadcast %109 : vector<1x128xf32> to vector<8x128xf32>
    %111 = arith.addf %108, %110 : vector<8x128xf32>
    %cst_36 = arith.constant 0.000000e+00 : f32
    %112 = vector.broadcast %cst_36 : f32 to vector<8x128xf32>
    %113 = arith.maximumf %111, %112 : vector<8x128xf32>
    %114 = tpu.iota {dimensions = array<i32: 0>} : vector<8x128xi32>
    %115 = vector.broadcast %0 : i32 to vector<8x128xi32>
    %116 = arith.addi %114, %115 : vector<8x128xi32>
    %117 = tpu.iota {dimensions = array<i32: 1>} : vector<8x128xi32>
    %c384_i32_37 = arith.constant 384 : i32
    %118 = vector.broadcast %c384_i32_37 : i32 to vector<8x128xi32>
    %119 = arith.muli %116, %118 : vector<8x128xi32>
    %c3_i32_38 = arith.constant 3 : i32
    %120 = vector.broadcast %c3_i32_38 : i32 to vector<8x128xi32>
    %121 = arith.muli %117, %120 : vector<8x128xi32>
    %122 = arith.addi %119, %121 : vector<8x128xi32>
    %c2_i32 = arith.constant 2 : i32
    %123 = vector.broadcast %c2_i32 : i32 to vector<8x128xi32>
    %124 = arith.addi %122, %123 : vector<8x128xi32>
    %c-1640531535_i32_39 = arith.constant -1640531535 : i32
    %125 = arith.muli %1, %c-1640531535_i32_39 : i32
    %126 = vector.broadcast %125 : i32 to vector<8x128xi32>
    %127 = arith.addi %124, %126 : vector<8x128xi32>
    %c16_i32_40 = arith.constant 16 : i32
    %128 = vector.broadcast %c16_i32_40 : i32 to vector<8x128xi32>
    %129 = arith.shrsi %127, %128 : vector<8x128xi32>
    %c65535_i32_41 = arith.constant 65535 : i32
    %130 = vector.broadcast %c65535_i32_41 : i32 to vector<8x128xi32>
    %131 = arith.andi %129, %130 : vector<8x128xi32>
    %132 = arith.xori %127, %131 : vector<8x128xi32>
    %c2146121005_i32_42 = arith.constant 2146121005 : i32
    %133 = vector.broadcast %c2146121005_i32_42 : i32 to vector<8x128xi32>
    %134 = arith.muli %132, %133 : vector<8x128xi32>
    %c15_i32_43 = arith.constant 15 : i32
    %135 = vector.broadcast %c15_i32_43 : i32 to vector<8x128xi32>
    %136 = arith.shrsi %134, %135 : vector<8x128xi32>
    %c131071_i32_44 = arith.constant 131071 : i32
    %137 = vector.broadcast %c131071_i32_44 : i32 to vector<8x128xi32>
    %138 = arith.andi %136, %137 : vector<8x128xi32>
    %139 = arith.xori %134, %138 : vector<8x128xi32>
    %c-2073319797_i32_45 = arith.constant -2073319797 : i32
    %140 = vector.broadcast %c-2073319797_i32_45 : i32 to vector<8x128xi32>
    %141 = arith.muli %139, %140 : vector<8x128xi32>
    %c16_i32_46 = arith.constant 16 : i32
    %142 = vector.broadcast %c16_i32_46 : i32 to vector<8x128xi32>
    %143 = arith.shrsi %141, %142 : vector<8x128xi32>
    %c65535_i32_47 = arith.constant 65535 : i32
    %144 = vector.broadcast %c65535_i32_47 : i32 to vector<8x128xi32>
    %145 = arith.andi %143, %144 : vector<8x128xi32>
    %146 = arith.xori %141, %145 : vector<8x128xi32>
    %c7_i32_48 = arith.constant 7 : i32
    %147 = vector.broadcast %c7_i32_48 : i32 to vector<8x128xi32>
    %148 = arith.shrsi %146, %147 : vector<8x128xi32>
    %c16777215_i32_49 = arith.constant 16777215 : i32
    %149 = vector.broadcast %c16777215_i32_49 : i32 to vector<8x128xi32>
    %150 = arith.andi %148, %149 : vector<8x128xi32>
    %c3355443_i32_50 = arith.constant 3355443 : i32
    %151 = vector.broadcast %c3355443_i32_50 : i32 to vector<8x128xi32>
    %152 = arith.cmpi sge, %150, %151 : vector<8x128xi32>
    %153 = arith.extui %152 : vector<8x128xi1> to vector<8x128xi32>
    %154 = arith.sitofp %153 : vector<8x128xi32> to vector<8x128xf32>
    %cst_51 = arith.constant 1.250000e+00 : f32
    %155 = vector.broadcast %cst_51 : f32 to vector<8x128xf32>
    %156 = arith.mulf %154, %155 : vector<8x128xf32>
    %157 = arith.mulf %113, %156 : vector<8x128xf32>
    %158 = arith.truncf %157 : vector<8x128xf32> to vector<8x128xbf16>
    %c0_52 = arith.constant 0 : index
    %c0_53 = arith.constant 0 : index
    %159 = vector.load %arg9[%c0_52, %c0_53] : memref<128x128xbf16, #tpu.memory_space<vmem>>, vector<128x128xbf16>
    %cst_54 = arith.constant dense<0.000000e+00> : vector<8x128xf32>
    %160 = tpu.matmul %158, %159, %cst_54 {dimension_numbers = #tpu.dot_dimension_numbers<[1], [0], [0], [1], [0, 0, 1, 1], [], []>} : vector<8x128xbf16>, vector<128x128xbf16>, vector<8x128xf32> -> vector<8x128xf32>
    %c0_55 = arith.constant 0 : index
    %c0_56 = arith.constant 0 : index
    %161 = vector.load %arg10[%c0_55, %c0_56] : memref<1x128xf32, #tpu.memory_space<vmem>>, vector<1x128xf32>
    %162 = vector.broadcast %161 : vector<1x128xf32> to vector<8x128xf32>
    %163 = arith.addf %160, %162 : vector<8x128xf32>
    %c0_57 = arith.constant 0 : index
    %c0_58 = arith.constant 0 : index
    %164 = vector.load %arg11[%c0_57, %c0_58] : memref<8x128xf32, #tpu.memory_space<vmem>>, vector<8x128xf32>
    tpu.vector_store %arg11[%c0_57, %c0_58], %163 {strides = array<i32>} : memref<8x128xf32, #tpu.memory_space<vmem>>, vector<8x128xf32>,
    return
  }
  func.func @transform_0(%arg0: i32, %arg1: memref<1xi32, #tpu.memory_space<smem>>) -> (i32, i32) {
    %c0_i32 = arith.constant 0 : i32
    %c0_i32_0 = arith.constant 0 : i32
    return %arg0, %c0_i32 : i32, i32
  }
  func.func @transform_1(%arg0: i32, %arg1: memref<1xi32, #tpu.memory_space<smem>>) -> (i32, i32) {
    %c0_i32 = arith.constant 0 : i32
    %c0_i32_0 = arith.constant 0 : i32
    %c0_i32_1 = arith.constant 0 : i32
    return %c0_i32, %c0_i32_0 : i32, i32
  }
  func.func @transform_2(%arg0: i32, %arg1: memref<1xi32, #tpu.memory_space<smem>>) -> (i32, i32) {
    %c0_i32 = arith.constant 0 : i32
    %c0_i32_0 = arith.constant 0 : i32
    %c0_i32_1 = arith.constant 0 : i32
    return %c0_i32, %c0_i32_0 : i32, i32
  }
  func.func @transform_3(%arg0: i32, %arg1: memref<1xi32, #tpu.memory_space<smem>>) -> (i32, i32) {
    %c0_i32 = arith.constant 0 : i32
    %c0_i32_0 = arith.constant 0 : i32
    %c0_i32_1 = arith.constant 0 : i32
    return %c0_i32, %c0_i32_0 : i32, i32
  }
  func.func @transform_4(%arg0: i32, %arg1: memref<1xi32, #tpu.memory_space<smem>>) -> (i32, i32) {
    %c0_i32 = arith.constant 0 : i32
    %c0_i32_0 = arith.constant 0 : i32
    %c0_i32_1 = arith.constant 0 : i32
    return %c0_i32, %c0_i32_0 : i32, i32
  }
  func.func @transform_5(%arg0: i32, %arg1: memref<1xi32, #tpu.memory_space<smem>>) -> (i32, i32) {
    %c0_i32 = arith.constant 0 : i32
    %c0_i32_0 = arith.constant 0 : i32
    %c0_i32_1 = arith.constant 0 : i32
    return %c0_i32, %c0_i32_0 : i32, i32
  }
  func.func @transform_6(%arg0: i32, %arg1: memref<1xi32, #tpu.memory_space<smem>>) -> (i32, i32) {
    %c0_i32 = arith.constant 0 : i32
    %c0_i32_0 = arith.constant 0 : i32
    %c0_i32_1 = arith.constant 0 : i32
    return %c0_i32, %c0_i32_0 : i32, i32
  }
  func.func @transform_7(%arg0: i32, %arg1: memref<1xi32, #tpu.memory_space<smem>>) -> (i32, i32) {
    %c0_i32 = arith.constant 0 : i32
    %c0_i32_0 = arith.constant 0 : i32
    %c0_i32_1 = arith.constant 0 : i32
    return %c0_i32, %c0_i32_0 : i32, i32
  }
  func.func @transform_8(%arg0: i32, %arg1: memref<1xi32, #tpu.memory_space<smem>>) -> (i32, i32) {
    %c0_i32 = arith.constant 0 : i32
    %c0_i32_0 = arith.constant 0 : i32
    %c0_i32_1 = arith.constant 0 : i32
    return %c0_i32, %c0_i32_0 : i32, i32
  }
  func.func @transform_9(%arg0: i32, %arg1: memref<1xi32, #tpu.memory_space<smem>>) -> (i32, i32) {
    %c0_i32 = arith.constant 0 : i32
    %c0_i32_0 = arith.constant 0 : i32
    return %arg0, %c0_i32 : i32, i32
  }
}

</mosaic_0001>

<llo_original>
// kernel: tpu_custom_call.1
$region0: #{tpu_custom_call.1}
  #allocation0 [shape = 'u32[]', space=smem, size = 0x4, offset = 0x4, fixed_abs, tag = 'smem constant byte address 0x4 - core index']
  #allocation1 [shape = 'u32[144,128]{1,0:T(1,128)}', space=vmem, size = 0x12000, scoped, tag = 'internal scratch']
  #allocation2 [shape = 's32[1]{0}', space=sflag, size = 0x4, scoped, tag = 'scoped memory for tpu_custom_call.1']
  #allocation3 [shape = 's32[1]{0:T(128)S(6)}', space=smem, size = 0x200, scoped, tag = 'prefetched SMEM operand 0']
  %s0 = inlined_call_operand.<no memory space> [shape: s32[1], index: 0, kind: input, shape index: {}]
  %s1 = inlined_call_operand.hbm [shape: bf16[8,896], index: 1, kind: input, shape index: {}]
  %s2 = inlined_call_operand.hbm [shape: bf16[896,128], index: 2, kind: input, shape index: {}]
  %s3 = inlined_call_operand.vmem [shape: f32[1,128], index: 3, kind: input, shape index: {}]
  %s4 = inlined_call_operand.hbm [shape: bf16[128,128], index: 4, kind: input, shape index: {}]
  %s5 = inlined_call_operand.vmem [shape: f32[1,128], index: 5, kind: input, shape index: {}]
  %s6 = inlined_call_operand.hbm [shape: bf16[128,128], index: 6, kind: input, shape index: {}]
  %s7 = inlined_call_operand.vmem [shape: f32[1,128], index: 7, kind: input, shape index: {}]
  %s8 = inlined_call_operand.hbm [shape: bf16[128,128], index: 8, kind: input, shape index: {}]
  %s9 = inlined_call_operand.vmem [shape: f32[1,128], index: 9, kind: input, shape index: {}]
  %s10 = inlined_call_operand.hbm [shape: f32[8,128], index: 10, kind: output, shape index: {}]
  %s11 = sld [smem:[#allocation0]]
  $region66: #{tpu_custom_call.1} parent=0
    _
  %s13 = ssub.s32 1, %s11
  %s14 = scalar_select 0, %s13, %s11
  %15 = sst [smem:[#allocation3]] %s0
  $region1: #{tpu_custom_call.1} parent=0
    #allocation4 [shape = 'u8[14336]{0}', space=vmem, size = 0x3800, scoped, tag = 'input window, operand 1, single buffered']
    #allocation5 [shape = 's32[1]{0}', space=sflag, size = 0x4, scoped, tag = 'scoped memory for tpu_custom_call.1']
    #allocation6 [shape = 's32[1]{0}', space=sflag, size = 0x4, scoped, tag = 'scoped memory for tpu_custom_call.1']
    #allocation7 [shape = 'u8[229376]{0}', space=vmem, size = 0x38000, scoped, tag = 'input window, operand 2, single buffered']
    #allocation8 [shape = 's32[1]{0}', space=sflag, size = 0x4, scoped, tag = 'scoped memory for tpu_custom_call.1']
    #allocation9 [shape = 'u8[32768]{0}', space=vmem, size = 0x8000, scoped, tag = 'input window, operand 4, single buffered']
    #allocation10 [shape = 'u8[32768]{0}', space=vmem, size = 0x8000, scoped, tag = 'input window, operand 6, single buffered']
    #allocation11 [shape = 's32[1]{0}', space=sflag, size = 0x4, scoped, tag = 'scoped memory for tpu_custom_call.1']
    #allocation12 [shape = 'u8[32768]{0}', space=vmem, size = 0x8000, scoped, tag = 'input window, operand 8, single buffered']
    #allocation13 [shape = 'u8[4096]{0}', space=vmem, size = 0x1000, scoped, tag = 'output window, operand 0, single buffered']
    %16 = vsyncpa [#allocation5], 0
    %17 = vsyncpa [#allocation8], 0
    %18 = vsyncpa [#allocation11], 0
    %19 = vsyncpa [#allocation6], 0
    // Predicated region
    $region2: #{tpu_custom_call.1} parent=1 // pred_check
      _
    $region3: #{tpu_custom_call.1} parent=1 // pred_check_branch
      %21 = sbr.rel (0) target = $region5
    $region4: #{tpu_custom_call.1} parent=1 // pred_region
      %s23 = ssub.s32 448, 448
      %24 = vsyncadd [#allocation5], %s23
      %s26 = sshll.u32 [#allocation4], 4
      %s27 = int_to_ptr.vmem [resolvable:$true] %s26
      %29 = dma.hbm_to_vmem [thread:$0]  %s1, 448, %s27, [#allocation5]
    $region5: #{tpu_custom_call.1} parent=1 // pred_fallthru
      _
    // Predicated region
    $region6: #{tpu_custom_call.1} parent=1 // pred_check
      _
    $region7: #{tpu_custom_call.1} parent=1 // pred_check_branch
      %31 = sbr.rel (0) target = $region9
    $region8: #{tpu_custom_call.1} parent=1 // pred_region
      %s33 = ssub.s32 7168, 7168
      %34 = vsyncadd [#allocation8], %s33
      %s35 = sshll.u32 [#allocation7], 4
      %s36 = int_to_ptr.vmem [resolvable:$true] %s35
      %41 = dma.hbm_to_vmem [thread:$0]  %s2, 7168, %s36, [#allocation8], 64, 64, 4
    $region9: #{tpu_custom_call.1} parent=1 // pred_fallthru
      _
    // Predicated region
    $region10: #{tpu_custom_call.1} parent=1 // pred_check
      _
    $region11: #{tpu_custom_call.1} parent=1 // pred_check_branch
      %43 = sbr.rel (0) target = $region13
    $region12: #{tpu_custom_call.1} parent=1 // pred_region
      _
    $region13: #{tpu_custom_call.1} parent=1 // pred_fallthru
      _
    // Predicated region
    $region14: #{tpu_custom_call.1} parent=1 // pred_check
      _
    $region15: #{tpu_custom_call.1} parent=1 // pred_check_branch
      %45 = sbr.rel (0) target = $region17
    $region16: #{tpu_custom_call.1} parent=1 // pred_region
      %s47 = ssub.s32 1024, 1024
      %48 = vsyncadd [#allocation8], %s47
      %s49 = sshll.u32 [#allocation9], 4
      %s50 = int_to_ptr.vmem [resolvable:$true] %s49
      %55 = dma.hbm_to_vmem [thread:$0]  %s4, 1024, %s50, [#allocation8], 64, 64, 4
    $region17: #{tpu_custom_call.1} parent=1 // pred_fallthru
      _
    // Predicated region
    $region18: #{tpu_custom_call.1} parent=1 // pred_check
      _
    $region19: #{tpu_custom_call.1} parent=1 // pred_check_branch
      %57 = sbr.rel (0) target = $region21
    $region20: #{tpu_custom_call.1} parent=1 // pred_region
      _
    $region21: #{tpu_custom_call.1} parent=1 // pred_fallthru
      _
    // Predicated region
    $region22: #{tpu_custom_call.1} parent=1 // pred_check
      _
    $region23: #{tpu_custom_call.1} parent=1 // pred_check_branch
      %59 = sbr.rel (0) target = $region25
    $region24: #{tpu_custom_call.1} parent=1 // pred_region
      %s61 = ssub.s32 1024, 1024
      %62 = vsyncadd [#allocation11], %s61
      %s63 = sshll.u32 [#allocation10], 4
      %s64 = int_to_ptr.vmem [resolvable:$true] %s63
      %69 = dma.hbm_to_vmem [thread:$0]  %s6, 1024, %s64, [#allocation11], 64, 64, 4
    $region25: #{tpu_custom_call.1} parent=1 // pred_fallthru
      _
    // Predicated region
    $region26: #{tpu_custom_call.1} parent=1 // pred_check
      _
    $region27: #{tpu_custom_call.1} parent=1 // pred_check_branch
      %71 = sbr.rel (0) target = $region29
    $region28: #{tpu_custom_call.1} parent=1 // pred_region
      _
    $region29: #{tpu_custom_call.1} parent=1 // pred_fallthru
      _
    // Predicated region
    $region30: #{tpu_custom_call.1} parent=1 // pred_check
      _
    $region31: #{tpu_custom_call.1} parent=1 // pred_check_branch
      %73 = sbr.rel (0) target = $region33
    $region32: #{tpu_custom_call.1} parent=1 // pred_region
      %s75 = ssub.s32 1024, 1024
      %76 = vsyncadd [#allocation11], %s75
      %s77 = sshll.u32 [#allocation12], 4
      %s78 = int_to_ptr.vmem [resolvable:$true] %s77
      %83 = dma.hbm_to_vmem [thread:$0]  %s8, 1024, %s78, [#allocation11], 64, 64, 4
    $region33: #{tpu_custom_call.1} parent=1 // pred_fallthru
      _
    // Predicated region
    $region34: #{tpu_custom_call.1} parent=1 // pred_check
      _
    $region35: #{tpu_custom_call.1} parent=1 // pred_check_branch
      %85 = sbr.rel (0) target = $region37
    $region36: #{tpu_custom_call.1} parent=1 // pred_region
      _
    $region37: #{tpu_custom_call.1} parent=1 // pred_fallthru
      _
    // Predicated region
    $region38: #{tpu_custom_call.1} parent=1 // pred_check
      _
    $region39: #{tpu_custom_call.1} parent=1 // pred_check_branch
      %87 = sbr.rel (0) target = $region41
    $region40: #{tpu_custom_call.1} parent=1 // pred_region
      %88 = dma.done [#allocation5], 448
    $region41: #{tpu_custom_call.1} parent=1 // pred_fallthru
      _
    // Predicated region
    $region42: #{tpu_custom_call.1} parent=1 // pred_check
      _
    $region43: #{tpu_custom_call.1} parent=1 // pred_check_branch
      %90 = sbr.rel (0) target = $region45
    $region44: #{tpu_custom_call.1} parent=1 // pred_region
      %91 = dma.done [#allocation8], 7168
    $region45: #{tpu_custom_call.1} parent=1 // pred_fallthru
      _
    // Predicated region
    $region46: #{tpu_custom_call.1} parent=1 // pred_check
      _
    $region47: #{tpu_custom_call.1} parent=1 // pred_check_branch
      %93 = sbr.rel (0) target = $region49
    $region48: #{tpu_custom_call.1} parent=1 // pred_region
      %94 = dma.done [#allocation8], 1024
    $region49: #{tpu_custom_call.1} parent=1 // pred_fallthru
      _
    // Predicated region
    $region50: #{tpu_custom_call.1} parent=1 // pred_check
      _
    $region51: #{tpu_custom_call.1} parent=1 // pred_check_branch
      %96 = sbr.rel (0) target = $region53
    $region52: #{tpu_custom_call.1} parent=1 // pred_region
      %97 = dma.done [#allocation11], 1024
    $region53: #{tpu_custom_call.1} parent=1 // pred_fallthru
      _
    // Predicated region
    $region54: #{tpu_custom_call.1} parent=1 // pred_check
      _
    $region55: #{tpu_custom_call.1} parent=1 // pred_check_branch
      %99 = sbr.rel (0) target = $region57
    $region56: #{tpu_custom_call.1} parent=1 // pred_region
      %100 = dma.done [#allocation11], 1024
    $region57: #{tpu_custom_call.1} parent=1 // pred_fallthru
      _
    %s102 = smul.u32 0, 8
    %s103 = sld [smem:[#allocation3]]
    %v104 = vld [vmem:[#allocation4] sm:$0xff]
    %v105 = vld [vmem:[#allocation4 + $0x8] sm:$0xff]
    %v106 = vld [vmem:[#allocation4 + $0x10] sm:$0xff]
    %v107 = vld [vmem:[#allocation4 + $0x18] sm:$0xf]
    %v108 = vld [vmem:[#allocation7] sm:$0xf]
    %v109 = vld [vmem:[#allocation7 + $0x4] sm:$0xf]
    %v110 = vld [vmem:[#allocation7 + $0x8] sm:$0xf]
    %v111 = vld [vmem:[#allocation7 + $0xc] sm:$0xf]
    %v112 = vld [vmem:[#allocation7 + $0x10] sm:$0xf]
    %v113 = vld [vmem:[#allocation7 + $0x14] sm:$0xf]
    %v114 = vld [vmem:[#allocation7 + $0x18] sm:$0xf]
    %v115 = vld [vmem:[#allocation7 + $0x1c] sm:$0xf]
    %v116 = vld [vmem:[#allocation7 + $0x20] sm:$0xf]
    %v117 = vld [vmem:[#allocation7 + $0x24] sm:$0xf]
    %v118 = vld [vmem:[#allocation7 + $0x28] sm:$0xf]
    %v119 = vld [vmem:[#allocation7 + $0x2c] sm:$0xf]
    %v120 = vld [vmem:[#allocation7 + $0x30] sm:$0xf]
    %v121 = vld [vmem:[#allocation7 + $0x34] sm:$0xf]
    %v122 = vld [vmem:[#allocation7 + $0x38] sm:$0xf]
    %v123 = vld [vmem:[#allocation7 + $0x3c] sm:$0xf]
    %v124 = vld [vmem:[#allocation7 + $0x40] sm:$0xf]
    %v125 = vld [vmem:[#allocation7 + $0x44] sm:$0xf]
    %v126 = vld [vmem:[#allocation7 + $0x48] sm:$0xf]
    %v127 = vld [vmem:[#allocation7 + $0x4c] sm:$0xf]
    %v128 = vld [vmem:[#allocation7 + $0x50] sm:$0xf]
    %v129 = vld [vmem:[#allocation7 + $0x54] sm:$0xf]
    %v130 = vld [vmem:[#allocation7 + $0x58] sm:$0xf]
    %v131 = vld [vmem:[#allocation7 + $0x5c] sm:$0xf]
    %v132 = vld [vmem:[#allocation7 + $0x60] sm:$0xf]
    %v133 = vld [vmem:[#allocation7 + $0x64] sm:$0xf]
    %v134 = vld [vmem:[#allocation7 + $0x68] sm:$0xf]
    %v135 = vld [vmem:[#allocation7 + $0x6c] sm:$0xf]
    %v136 = vld [vmem:[#allocation7 + $0x70] sm:$0xf]
    %v137 = vld [vmem:[#allocation7 + $0x74] sm:$0xf]
    %v138 = vld [vmem:[#allocation7 + $0x78] sm:$0xf]
    %v139 = vld [vmem:[#allocation7 + $0x7c] sm:$0xf]
    %v140 = vld [vmem:[#allocation7 + $0x80] sm:$0xf]
    %v141 = vld [vmem:[#allocation7 + $0x84] sm:$0xf]
    %v142 = vld [vmem:[#allocation7 + $0x88] sm:$0xf]
    %v143 = vld [vmem:[#allocation7 + $0x8c] sm:$0xf]
    %v144 = vld [vmem:[#allocation7 + $0x90] sm:$0xf]
    %v145 = vld [vmem:[#allocation7 + $0x94] sm:$0xf]
    %v146 = vld [vmem:[#allocation7 + $0x98] sm:$0xf]
    %v147 = vld [vmem:[#allocation7 + $0x9c] sm:$0xf]
    %v148 = vld [vmem:[#allocation7 + $0xa0] sm:$0xf]
    %v149 = vld [vmem:[#allocation7 + $0xa4] sm:$0xf]
    %v150 = vld [vmem:[#allocation7 + $0xa8] sm:$0xf]
    %v151 = vld [vmem:[#allocation7 + $0xac] sm:$0xf]
    %v152 = vld [vmem:[#allocation7 + $0xb0] sm:$0xf]
    %v153 = vld [vmem:[#allocation7 + $0xb4] sm:$0xf]
    %v154 = vld [vmem:[#allocation7 + $0xb8] sm:$0xf]
    %v155 = vld [vmem:[#allocation7 + $0xbc] sm:$0xf]
    %v156 = vld [vmem:[#allocation7 + $0xc0] sm:$0xf]
    %v157 = vld [vmem:[#allocation7 + $0xc4] sm:$0xf]
    %v158 = vld [vmem:[#allocation7 + $0xc8] sm:$0xf]
    %v159 = vld [vmem:[#allocation7 + $0xcc] sm:$0xf]
    %v160 = vld [vmem:[#allocation7 + $0xd0] sm:$0xf]
    %v161 = vld [vmem:[#allocation7 + $0xd4] sm:$0xf]
    %v162 = vld [vmem:[#allocation7 + $0xd8] sm:$0xf]
    %v163 = vld [vmem:[#allocation7 + $0xdc] sm:$0xf]
    %v164 = vld [vmem:[#allocation7 + $0xe0] sm:$0xf]
    %v165 = vld [vmem:[#allocation7 + $0xe4] sm:$0xf]
    %v166 = vld [vmem:[#allocation7 + $0xe8] sm:$0xf]
    %v167 = vld [vmem:[#allocation7 + $0xec] sm:$0xf]
    %v168 = vld [vmem:[#allocation7 + $0xf0] sm:$0xf]
    %v169 = vld [vmem:[#allocation7 + $0xf4] sm:$0xf]
    %v170 = vld [vmem:[#allocation7 + $0xf8] sm:$0xf]
    %v171 = vld [vmem:[#allocation7 + $0xfc] sm:$0xf]
    %v172 = vld [vmem:[#allocation7 + $0x100] sm:$0xf]
    %v173 = vld [vmem:[#allocation7 + $0x104] sm:$0xf]
    %v174 = vld [vmem:[#allocation7 + $0x108] sm:$0xf]
    %v175 = vld [vmem:[#allocation7 + $0x10c] sm:$0xf]
    %v176 = vld [vmem:[#allocation7 + $0x110] sm:$0xf]
    %v177 = vld [vmem:[#allocation7 + $0x114] sm:$0xf]
    %v178 = vld [vmem:[#allocation7 + $0x118] sm:$0xf]
    %v179 = vld [vmem:[#allocation7 + $0x11c] sm:$0xf]
    %v180 = vld [vmem:[#allocation7 + $0x120] sm:$0xf]
    %v181 = vld [vmem:[#allocation7 + $0x124] sm:$0xf]
    %v182 = vld [vmem:[#allocation7 + $0x128] sm:$0xf]
    %v183 = vld [vmem:[#allocation7 + $0x12c] sm:$0xf]
    %v184 = vld [vmem:[#allocation7 + $0x130] sm:$0xf]
    %v185 = vld [vmem:[#allocation7 + $0x134] sm:$0xf]
    %v186 = vld [vmem:[#allocation7 + $0x138] sm:$0xf]
    %v187 = vld [vmem:[#allocation7 + $0x13c] sm:$0xf]
    %v188 = vld [vmem:[#allocation7 + $0x140] sm:$0xf]
    %v189 = vld [vmem:[#allocation7 + $0x144] sm:$0xf]
    %v190 = vld [vmem:[#allocation7 + $0x148] sm:$0xf]
    %v191 = vld [vmem:[#allocation7 + $0x14c] sm:$0xf]
    %v192 = vld [vmem:[#allocation7 + $0x150] sm:$0xf]
    %v193 = vld [vmem:[#allocation7 + $0x154] sm:$0xf]
    %v194 = vld [vmem:[#allocation7 + $0x158] sm:$0xf]
    %v195 = vld [vmem:[#allocation7 + $0x15c] sm:$0xf]
    %v196 = vld [vmem:[#allocation7 + $0x160] sm:$0xf]
    %v197 = vld [vmem:[#allocation7 + $0x164] sm:$0xf]
    %v198 = vld [vmem:[#allocation7 + $0x168] sm:$0xf]
    %v199 = vld [vmem:[#allocation7 + $0x16c] sm:$0xf]
    %v200 = vld [vmem:[#allocation7 + $0x170] sm:$0xf]
    %v201 = vld [vmem:[#allocation7 + $0x174] sm:$0xf]
    %v202 = vld [vmem:[#allocation7 + $0x178] sm:$0xf]
    %v203 = vld [vmem:[#allocation7 + $0x17c] sm:$0xf]
    %v204 = vld [vmem:[#allocation7 + $0x180] sm:$0xf]
    %v205 = vld [vmem:[#allocation7 + $0x184] sm:$0xf]
    %v206 = vld [vmem:[#allocation7 + $0x188] sm:$0xf]
    %v207 = vld [vmem:[#allocation7 + $0x18c] sm:$0xf]
    %v208 = vld [vmem:[#allocation7 + $0x190] sm:$0xf]
    %v209 = vld [vmem:[#allocation7 + $0x194] sm:$0xf]
    %v210 = vld [vmem:[#allocation7 + $0x198] sm:$0xf]
    %v211 = vld [vmem:[#allocation7 + $0x19c] sm:$0xf]
    %v212 = vld [vmem:[#allocation7 + $0x1a0] sm:$0xf]
    %v213 = vld [vmem:[#allocation7 + $0x1a4] sm:$0xf]
    %v214 = vld [vmem:[#allocation7 + $0x1a8] sm:$0xf]
    %v215 = vld [vmem:[#allocation7 + $0x1ac] sm:$0xf]
    %v216 = vld [vmem:[#allocation7 + $0x1b0] sm:$0xf]
    %v217 = vld [vmem:[#allocation7 + $0x1b4] sm:$0xf]
    %v218 = vld [vmem:[#allocation7 + $0x1b8] sm:$0xf]
    %v219 = vld [vmem:[#allocation7 + $0x1bc] sm:$0xf]
    %v220 = vld [vmem:[%s3] sm:$0x1]
    %v222 = vlaneseq
    %v223 = vshrl.u32 %v222, 7
    %v224 = vsub.s32 0, %v223
    %v225 = vrot.slane %v220, %v224
    %v231 = vunpack.c.l.b16 %v104
    %v232 = vunpack.c.h.b16 %v104
    %v233 = vunpack.c.l.b16 %v105
    %v234 = vunpack.c.h.b16 %v105
    %v235 = vunpack.c.l.b16 %v106
    %v236 = vunpack.c.h.b16 %v106
    %v237 = vunpack.c.l.b16 %v107
    %v238 = vpack.c.b16 %v231, %v231
    %v239 = vpack.c.b16 %v232, %v232
    %v240 = vpack.c.b16 %v233, %v233
    %v241 = vpack.c.b16 %v234, %v234
    %v242 = vpack.c.b16 %v235, %v235
    %v243 = vpack.c.b16 %v236, %v236
    %v244 = vpack.c.b16 %v237, %v237
    %v364 = vunpack.c.l.b16 %v108
    %v365 = vunpack.c.l.b16 %v109
    %v366 = vunpack.c.l.b16 %v110
    %v367 = vunpack.c.l.b16 %v111
    %v368 = vunpack.c.l.b16 %v112
    %v369 = vunpack.c.l.b16 %v113
    %v370 = vunpack.c.l.b16 %v114
    %v371 = vunpack.c.l.b16 %v115
    %v372 = vunpack.c.l.b16 %v116
    %v373 = vunpack.c.l.b16 %v117
    %v374 = vunpack.c.l.b16 %v118
    %v375 = vunpack.c.l.b16 %v119
    %v376 = vunpack.c.l.b16 %v120
    %v377 = vunpack.c.l.b16 %v121
    %v378 = vunpack.c.l.b16 %v122
    %v379 = vunpack.c.l.b16 %v123
    %v380 = vunpack.c.l.b16 %v124
    %v381 = vunpack.c.l.b16 %v125
    %v382 = vunpack.c.l.b16 %v126
    %v383 = vunpack.c.l.b16 %v127
    %v384 = vunpack.c.l.b16 %v128
    %v385 = vunpack.c.l.b16 %v129
    %v386 = vunpack.c.l.b16 %v130
    %v387 = vunpack.c.l.b16 %v131
    %v388 = vunpack.c.l.b16 %v132
    %v389 = vunpack.c.l.b16 %v133
    %v390 = vunpack.c.l.b16 %v134
    %v391 = vunpack.c.l.b16 %v135
    %v392 = vunpack.c.l.b16 %v136
    %v393 = vunpack.c.l.b16 %v137
    %v394 = vunpack.c.l.b16 %v138
    %v395 = vunpack.c.l.b16 %v139
    %v396 = vunpack.c.l.b16 %v140
    %v397 = vunpack.c.l.b16 %v141
    %v398 = vunpack.c.l.b16 %v142
    %v399 = vunpack.c.l.b16 %v143
    %v400 = vunpack.c.l.b16 %v144
    %v401 = vunpack.c.l.b16 %v145
    %v402 = vunpack.c.l.b16 %v146
    %v403 = vunpack.c.l.b16 %v147
    %v404 = vunpack.c.l.b16 %v148
    %v405 = vunpack.c.l.b16 %v149
    %v406 = vunpack.c.l.b16 %v150
    %v407 = vunpack.c.l.b16 %v151
    %v408 = vunpack.c.l.b16 %v152
    %v409 = vunpack.c.l.b16 %v153
    %v410 = vunpack.c.l.b16 %v154
    %v411 = vunpack.c.l.b16 %v155
    %v412 = vunpack.c.l.b16 %v156
    %v413 = vunpack.c.l.b16 %v157
    %v414 = vunpack.c.l.b16 %v158
    %v415 = vunpack.c.l.b16 %v159
    %v416 = vunpack.c.l.b16 %v160
    %v417 = vunpack.c.l.b16 %v161
    %v418 = vunpack.c.l.b16 %v162
    %v419 = vunpack.c.l.b16 %v163
    %v420 = vunpack.c.l.b16 %v164
    %v421 = vunpack.c.l.b16 %v165
    %v422 = vunpack.c.l.b16 %v166
    %v423 = vunpack.c.l.b16 %v167
    %v424 = vunpack.c.l.b16 %v168
    %v425 = vunpack.c.l.b16 %v169
    %v426 = vunpack.c.l.b16 %v170
    %v427 = vunpack.c.l.b16 %v171
    %v428 = vunpack.c.l.b16 %v172
    %v429 = vunpack.c.l.b16 %v173
    %v430 = vunpack.c.l.b16 %v174
    %v431 = vunpack.c.l.b16 %v175
    %v432 = vunpack.c.l.b16 %v176
    %v433 = vunpack.c.l.b16 %v177
    %v434 = vunpack.c.l.b16 %v178
    %v435 = vunpack.c.l.b16 %v179
    %v436 = vunpack.c.l.b16 %v180
    %v437 = vunpack.c.l.b16 %v181
    %v438 = vunpack.c.l.b16 %v182
    %v439 = vunpack.c.l.b16 %v183
    %v440 = vunpack.c.l.b16 %v184
    %v441 = vunpack.c.l.b16 %v185
    %v442 = vunpack.c.l.b16 %v186
    %v443 = vunpack.c.l.b16 %v187
    %v444 = vunpack.c.l.b16 %v188
    %v445 = vunpack.c.l.b16 %v189
    %v446 = vunpack.c.l.b16 %v190
    %v447 = vunpack.c.l.b16 %v191
    %v448 = vunpack.c.l.b16 %v192
    %v449 = vunpack.c.l.b16 %v193
    %v450 = vunpack.c.l.b16 %v194
    %v451 = vunpack.c.l.b16 %v195
    %v452 = vunpack.c.l.b16 %v196
    %v453 = vunpack.c.l.b16 %v197
    %v454 = vunpack.c.l.b16 %v198
    %v455 = vunpack.c.l.b16 %v199
    %v456 = vunpack.c.l.b16 %v200
    %v457 = vunpack.c.l.b16 %v201
    %v458 = vunpack.c.l.b16 %v202
    %v459 = vunpack.c.l.b16 %v203
    %v460 = vunpack.c.l.b16 %v204
    %v461 = vunpack.c.l.b16 %v205
    %v462 = vunpack.c.l.b16 %v206
    %v463 = vunpack.c.l.b16 %v207
    %v464 = vunpack.c.l.b16 %v208
    %v465 = vunpack.c.l.b16 %v209
    %v466 = vunpack.c.l.b16 %v210
    %v467 = vunpack.c.l.b16 %v211
    %v468 = vunpack.c.l.b16 %v212
    %v469 = vunpack.c.l.b16 %v213
    %v470 = vunpack.c.l.b16 %v214
    %v471 = vunpack.c.l.b16 %v215
    %v472 = vunpack.c.l.b16 %v216
    %v473 = vunpack.c.l.b16 %v217
    %v474 = vunpack.c.l.b16 %v218
    %v475 = vunpack.c.l.b16 %v219
    %v476 = vpack.c.b16 %v365, %v364
    %v477 = vpack.c.b16 %v367, %v366
    %v478 = vpack.c.b16 %v369, %v368
    %v479 = vpack.c.b16 %v371, %v370
    %v480 = vpack.c.b16 %v373, %v372
    %v481 = vpack.c.b16 %v375, %v374
    %v482 = vpack.c.b16 %v377, %v376
    %v483 = vpack.c.b16 %v379, %v378
    %v484 = vpack.c.b16 %v381, %v380
    %v485 = vpack.c.b16 %v383, %v382
    %v486 = vpack.c.b16 %v385, %v384
    %v487 = vpack.c.b16 %v387, %v386
    %v488 = vpack.c.b16 %v389, %v388
    %v489 = vpack.c.b16 %v391, %v390
    %v490 = vpack.c.b16 %v393, %v392
    %v491 = vpack.c.b16 %v395, %v394
    %v492 = vpack.c.b16 %v397, %v396
    %v493 = vpack.c.b16 %v399, %v398
    %v494 = vpack.c.b16 %v401, %v400
    %v495 = vpack.c.b16 %v403, %v402
    %v496 = vpack.c.b16 %v405, %v404
    %v497 = vpack.c.b16 %v407, %v406
    %v498 = vpack.c.b16 %v409, %v408
    %v499 = vpack.c.b16 %v411, %v410
    %v500 = vpack.c.b16 %v413, %v412
    %v501 = vpack.c.b16 %v415, %v414
    %v502 = vpack.c.b16 %v417, %v416
    %v503 = vpack.c.b16 %v419, %v418
    %v504 = vpack.c.b16 %v421, %v420
    %v505 = vpack.c.b16 %v423, %v422
    %v506 = vpack.c.b16 %v425, %v424
    %v507 = vpack.c.b16 %v427, %v426
    %v508 = vpack.c.b16 %v429, %v428
    %v509 = vpack.c.b16 %v431, %v430
    %v510 = vpack.c.b16 %v433, %v432
    %v511 = vpack.c.b16 %v435, %v434
    %v512 = vpack.c.b16 %v437, %v436
    %v513 = vpack.c.b16 %v439, %v438
    %v514 = vpack.c.b16 %v441, %v440
    %v515 = vpack.c.b16 %v443, %v442
    %v516 = vpack.c.b16 %v445, %v444
    %v517 = vpack.c.b16 %v447, %v446
    %v518 = vpack.c.b16 %v449, %v448
    %v519 = vpack.c.b16 %v451, %v450
    %v520 = vpack.c.b16 %v453, %v452
    %v521 = vpack.c.b16 %v455, %v454
    %v522 = vpack.c.b16 %v457, %v456
    %v523 = vpack.c.b16 %v459, %v458
    %v524 = vpack.c.b16 %v461, %v460
    %v525 = vpack.c.b16 %v463, %v462
    %v526 = vpack.c.b16 %v465, %v464
    %v527 = vpack.c.b16 %v467, %v466
    %v528 = vpack.c.b16 %v469, %v468
    %v529 = vpack.c.b16 %v471, %v470
    %v530 = vpack.c.b16 %v473, %v472
    %v531 = vpack.c.b16 %v475, %v474
    %588 = vmatprep.subr.bf16.mxu0 0
    %589 = vmatpush1.bf16.msra.mxu0 %v476
    %590 = vmatprep.subr.bf16.mxu0 0
    %591 = vmatpush1.bf16.msra.mxu0 %v477
    %592 = vmatprep.subr.bf16.mxu0 0
    %593 = vmatpush1.bf16.msra.mxu0 %v478
    %594 = vmatprep.subr.bf16.mxu0 0
    %595 = vmatpush1.bf16.msra.mxu0 %v479
    %596 = vmatprep.subr.bf16.mxu0 0
    %597 = vmatpush1.bf16.msra.mxu0 %v480
    %598 = vmatprep.subr.bf16.mxu0 0
    %599 = vmatpush1.bf16.msra.mxu0 %v481
    %600 = vmatprep.subr.bf16.mxu0 0
    %601 = vmatpush1.bf16.msra.mxu0 %v482
    %602 = vmatprep.subr.bf16.mxu0 0
    %603 = vmatpush1.bf16.msra.mxu0 %v483
    %604 = vmatprep.subr.bf16.mxu0 0
    %605 = vmatpush1.bf16.msra.mxu0 %v484
    %606 = vmatprep.subr.bf16.mxu0 0
    %607 = vmatpush1.bf16.msra.mxu0 %v485
    %608 = vmatprep.subr.bf16.mxu0 0
    %609 = vmatpush1.bf16.msra.mxu0 %v486
    %610 = vmatprep.subr.bf16.mxu0 0
    %611 = vmatpush1.bf16.msra.mxu0 %v487
    %612 = vmatprep.subr.bf16.mxu0 0
    %613 = vmatpush1.bf16.msra.mxu0 %v488
    %614 = vmatprep.subr.bf16.mxu0 0
    %615 = vmatpush1.bf16.msra.mxu0 %v489
    %616 = vmatprep.subr.bf16.mxu0 0
    %617 = vmatpush1.bf16.msra.mxu0 %v490
    %618 = vmatprep.subr.bf16.mxu0 0
    %619 = vmatpush1.bf16.msra.mxu0 %v491
    %620 = vmatprep.mubr.bf16.mxu0 %v239
    %621 = vmatmul.mubr.bf16.gmra.mrb[0].mxu0 %v238
    %v622 = vpop.f32.mrb[0].mxu0
    %v623 = vadd.f32 %v225, %v622
    %v624 = vpop.f32.mrb[0].mxu0
    %v625 = vpop.f32.mrb[0].mxu0
    %v626 = vpop.f32.mrb[0].mxu0
    %627 = vdwg.mxu0
    %628 = vmatprep.subr.bf16.mxu0 0
    %629 = vmatpush1.bf16.msra.mxu0 %v492
    %630 = vmatprep.subr.bf16.mxu0 0
    %631 = vmatpush1.bf16.msra.mxu0 %v493
    %632 = vmatprep.subr.bf16.mxu0 0
    %633 = vmatpush1.bf16.msra.mxu0 %v494
    %634 = vmatprep.subr.bf16.mxu0 0
    %635 = vmatpush1.bf16.msra.mxu0 %v495
    %636 = vmatprep.subr.bf16.mxu0 0
    %637 = vmatpush1.bf16.msra.mxu0 %v496
    %638 = vmatprep.subr.bf16.mxu0 0
    %639 = vmatpush1.bf16.msra.mxu0 %v497
    %640 = vmatprep.subr.bf16.mxu0 0
    %641 = vmatpush1.bf16.msra.mxu0 %v498
    %642 = vmatprep.subr.bf16.mxu0 0
    %643 = vmatpush1.bf16.msra.mxu0 %v499
    %644 = vmatprep.subr.bf16.mxu0 0
    %645 = vmatpush1.bf16.msra.mxu0 %v500
    %646 = vmatprep.subr.bf16.mxu0 0
    %647 = vmatpush1.bf16.msra.mxu0 %v501
    %648 = vmatprep.subr.bf16.mxu0 0
    %649 = vmatpush1.bf16.msra.mxu0 %v502
    %650 = vmatprep.subr.bf16.mxu0 0
    %651 = vmatpush1.bf16.msra.mxu0 %v503
    %652 = vmatprep.subr.bf16.mxu0 0
    %653 = vmatpush1.bf16.msra.mxu0 %v504
    %654 = vmatprep.subr.bf16.mxu0 0
    %655 = vmatpush1.bf16.msra.mxu0 %v505
    %656 = vmatprep.subr.bf16.mxu0 0
    %657 = vmatpush1.bf16.msra.mxu0 %v506
    %658 = vmatprep.subr.bf16.mxu0 0
    %659 = vmatpush1.bf16.msra.mxu0 %v507
    %660 = vmatprep.mubr.bf16.mxu0 %v241
    %661 = vmatmul.mubr.bf16.gmra.mrb[0].mxu0 %v240
    %v662 = vpop.f32.mrb[0].mxu0
    %v663 = vadd.f32 %v623, %v662
    %v664 = vpop.f32.mrb[0].mxu0
    %v665 = vpop.f32.mrb[0].mxu0
    %v666 = vpop.f32.mrb[0].mxu0
    %667 = vdwg.mxu0
    %668 = vmatprep.subr.bf16.mxu0 0
    %669 = vmatpush1.bf16.msra.mxu0 %v508
    %670 = vmatprep.subr.bf16.mxu0 0
    %671 = vmatpush1.bf16.msra.mxu0 %v509
    %672 = vmatprep.subr.bf16.mxu0 0
    %673 = vmatpush1.bf16.msra.mxu0 %v510
    %674 = vmatprep.subr.bf16.mxu0 0
    %675 = vmatpush1.bf16.msra.mxu0 %v511
    %676 = vmatprep.subr.bf16.mxu0 0
    %677 = vmatpush1.bf16.msra.mxu0 %v512
    %678 = vmatprep.subr.bf16.mxu0 0
    %679 = vmatpush1.bf16.msra.mxu0 %v513
    %680 = vmatprep.subr.bf16.mxu0 0
    %681 = vmatpush1.bf16.msra.mxu0 %v514
    %682 = vmatprep.subr.bf16.mxu0 0
    %683 = vmatpush1.bf16.msra.mxu0 %v515
    %684 = vmatprep.subr.bf16.mxu0 0
    %685 = vmatpush1.bf16.msra.mxu0 %v516
    %686 = vmatprep.subr.bf16.mxu0 0
    %687 = vmatpush1.bf16.msra.mxu0 %v517
    %688 = vmatprep.subr.bf16.mxu0 0
    %689 = vmatpush1.bf16.msra.mxu0 %v518
    %690 = vmatprep.subr.bf16.mxu0 0
    %691 = vmatpush1.bf16.msra.mxu0 %v519
    %692 = vmatprep.subr.bf16.mxu0 0
    %693 = vmatpush1.bf16.msra.mxu0 %v520
    %694 = vmatprep.subr.bf16.mxu0 0
    %695 = vmatpush1.bf16.msra.mxu0 %v521
    %696 = vmatprep.subr.bf16.mxu0 0
    %697 = vmatpush1.bf16.msra.mxu0 %v522
    %698 = vmatprep.subr.bf16.mxu0 0
    %699 = vmatpush1.bf16.msra.mxu0 %v523
    %700 = vmatprep.mubr.bf16.mxu0 %v243
    %701 = vmatmul.mubr.bf16.gmra.mrb[0].mxu0 %v242
    %v702 = vpop.f32.mrb[0].mxu0
    %v703 = vadd.f32 %v663, %v702
    %v704 = vpop.f32.mrb[0].mxu0
    %v705 = vpop.f32.mrb[0].mxu0
    %v706 = vpop.f32.mrb[0].mxu0
    %707 = vdwg.mxu0
    %708 = vmatprep.subr.bf16.mxu0 0
    %709 = vmatpush1.bf16.msra.mxu0 %v524
    %710 = vmatprep.subr.bf16.mxu0 0
    %711 = vmatpush1.bf16.msra.mxu0 %v525
    %712 = vmatprep.subr.bf16.mxu0 0
    %713 = vmatpush1.bf16.msra.mxu0 %v526
    %714 = vmatprep.subr.bf16.mxu0 0
    %715 = vmatpush1.bf16.msra.mxu0 %v527
    %716 = vmatprep.subr.bf16.mxu0 0
    %717 = vmatpush1.bf16.msra.mxu0 %v528
    %718 = vmatprep.subr.bf16.mxu0 0
    %719 = vmatpush1.bf16.msra.mxu0 %v529
    %720 = vmatprep.subr.bf16.mxu0 0
    %721 = vmatpush1.bf16.msra.mxu0 %v530
    %722 = vmatprep.subr.bf16.mxu0 0
    %723 = vmatpush1.bf16.msra.mxu0 %v531
    %724 = vmatprep.subr.bf16.mxu0 0
    %725 = vmatpush1.bf16.msra.mxu0 0
    %726 = vmatprep.subr.bf16.mxu0 0
    %727 = vmatpush1.bf16.msra.mxu0 0
    %728 = vmatprep.subr.bf16.mxu0 0
    %729 = vmatpush1.bf16.msra.mxu0 0
    %730 = vmatprep.subr.bf16.mxu0 0
    %731 = vmatpush1.bf16.msra.mxu0 0
    %732 = vmatprep.subr.bf16.mxu0 0
    %733 = vmatpush1.bf16.msra.mxu0 0
    %734 = vmatprep.subr.bf16.mxu0 0
    %735 = vmatpush1.bf16.msra.mxu0 0
    %736 = vmatprep.subr.bf16.mxu0 0
    %737 = vmatpush1.bf16.msra.mxu0 0
    %738 = vmatprep.subr.bf16.mxu0 0
    %739 = vmatpush1.bf16.msra.mxu0 0
    %740 = vmatprep.mubr.bf16.mxu0 0
    %741 = vmatmul.mubr.bf16.gmra.mrb[0].mxu0 %v244
    %v742 = vpop.f32.mrb[0].mxu0
    %v743 = vadd.f32 %v703, %v742
    %v744 = vpop.f32.mrb[0].mxu0
    %v745 = vpop.f32.mrb[0].mxu0
    %v746 = vpop.f32.mrb[0].mxu0
    %747 = vdwg.mxu0
    %v748 = vmax.f32 %v743, 0.0
    %v749 = vlaneseq
    %v750 = vshrl.u32 %v749, 7
    %v751 = vstv %s102
    %v752 = vadd.s32 %v750, %v751
    %v753 = vlaneseq
    %v754 = vand.u32 %v753, 127
    %v755 = vmul.u32 %v752, 384
    %v756 = vmul.u32 %v754, 3
    %v757 = vadd.s32 %v755, %v756
    %s758 = smul.u32 %s103, 2654435761
    %v759 = vstv %s758
    %v760 = vadd.s32 %v757, %v759
    %v761 = vshra.s32 %v760, 16
    %v762 = vand.u32 %v761, 65535
    %v763 = vxor.u32 %v760, %v762
    %v764 = vmul.u32 %v763, 2146121005
    %v765 = vshra.s32 %v764, 15
    %v766 = vand.u32 %v765, 131071
    %v767 = vxor.u32 %v764, %v766
    %v768 = vmul.u32 %v767, 2221647499
    %v769 = vshra.s32 %v768, 16
    %v770 = vand.u32 %v769, 65535
    %v771 = vxor.u32 %v768, %v770
    %v772 = vshra.s32 %v771, 7
    %v773 = vand.u32 %v772, 16777215
    %vm774 = vcmp.ge.s32.totalorder %v773, 3355443
    %v775 = vsel %vm774, 1, 0
    %v776 = vcvt.s32.f32 %v775
    %v777 = vmul.f32 %v776, 1.25
    %v778 = vmul.f32 %v748, %v777
    %v779 = vpack.c.bf16 %v778, %v778
    %v780 = vld [vmem:[#allocation9] sm:$0xf]
    %v781 = vld [vmem:[#allocation9 + $0x4] sm:$0xf]
    %v782 = vld [vmem:[#allocation9 + $0x8] sm:$0xf]
    %v783 = vld [vmem:[#allocation9 + $0xc] sm:$0xf]
    %v784 = vld [vmem:[#allocation9 + $0x10] sm:$0xf]
    %v785 = vld [vmem:[#allocation9 + $0x14] sm:$0xf]
    %v786 = vld [vmem:[#allocation9 + $0x18] sm:$0xf]
    %v787 = vld [vmem:[#allocation9 + $0x1c] sm:$0xf]
    %v788 = vld [vmem:[#allocation9 + $0x20] sm:$0xf]
    %v789 = vld [vmem:[#allocation9 + $0x24] sm:$0xf]
    %v790 = vld [vmem:[#allocation9 + $0x28] sm:$0xf]
    %v791 = vld [vmem:[#allocation9 + $0x2c] sm:$0xf]
    %v792 = vld [vmem:[#allocation9 + $0x30] sm:$0xf]
    %v793 = vld [vmem:[#allocation9 + $0x34] sm:$0xf]
    %v794 = vld [vmem:[#allocation9 + $0x38] sm:$0xf]
    %v795 = vld [vmem:[#allocation9 + $0x3c] sm:$0xf]
    %v796 = vld [vmem:[%s5] sm:$0x1]
    %v798 = vlaneseq
    %v799 = vshrl.u32 %v798, 7
    %v800 = vsub.s32 0, %v799
    %v801 = vrot.slane %v796, %v800
    %v819 = vunpack.c.l.b16 %v780
    %v820 = vunpack.c.l.b16 %v781
    %v821 = vunpack.c.l.b16 %v782
    %v822 = vunpack.c.l.b16 %v783
    %v823 = vunpack.c.l.b16 %v784
    %v824 = vunpack.c.l.b16 %v785
    %v825 = vunpack.c.l.b16 %v786
    %v826 = vunpack.c.l.b16 %v787
    %v827 = vunpack.c.l.b16 %v788
    %v828 = vunpack.c.l.b16 %v789
    %v829 = vunpack.c.l.b16 %v790
    %v830 = vunpack.c.l.b16 %v791
    %v831 = vunpack.c.l.b16 %v792
    %v832 = vunpack.c.l.b16 %v793
    %v833 = vunpack.c.l.b16 %v794
    %v834 = vunpack.c.l.b16 %v795
    %v835 = vpack.c.b16 %v820, %v819
    %v836 = vpack.c.b16 %v822, %v821
    %v837 = vpack.c.b16 %v824, %v823
    %v838 = vpack.c.b16 %v826, %v825
    %v839 = vpack.c.b16 %v828, %v827
    %v840 = vpack.c.b16 %v830, %v829
    %v841 = vpack.c.b16 %v832, %v831
    %v842 = vpack.c.b16 %v834, %v833
    %851 = vmatprep.subr.bf16.mxu0 0
    %852 = vmatpush1.bf16.msra.mxu0 %v835
    %853 = vmatprep.subr.bf16.mxu0 0
    %854 = vmatpush1.bf16.msra.mxu0 %v836
    %855 = vmatprep.subr.bf16.mxu0 0
    %856 = vmatpush1.bf16.msra.mxu0 %v837
    %857 = vmatprep.subr.bf16.mxu0 0
    %858 = vmatpush1.bf16.msra.mxu0 %v838
    %859 = vmatprep.subr.bf16.mxu0 0
    %860 = vmatpush1.bf16.msra.mxu0 %v839
    %861 = vmatprep.subr.bf16.mxu0 0
    %862 = vmatpush1.bf16.msra.mxu0 %v840
    %863 = vmatprep.subr.bf16.mxu0 0
    %864 = vmatpush1.bf16.msra.mxu0 %v841
    %865 = vmatprep.subr.bf16.mxu0 0
    %866 = vmatpush1.bf16.msra.mxu0 %v842
    %867 = vmatprep.subr.bf16.mxu0 0
    %868 = vmatpush1.bf16.msra.mxu0 0
    %869 = vmatprep.subr.bf16.mxu0 0
    %870 = vmatpush1.bf16.msra.mxu0 0
    %871 = vmatprep.subr.bf16.mxu0 0
    %872 = vmatpush1.bf16.msra.mxu0 0
    %873 = vmatprep.subr.bf16.mxu0 0
    %874 = vmatpush1.bf16.msra.mxu0 0
    %875 = vmatprep.subr.bf16.mxu0 0
    %876 = vmatpush1.bf16.msra.mxu0 0
    %877 = vmatprep.subr.bf16.mxu0 0
    %878 = vmatpush1.bf16.msra.mxu0 0
    %879 = vmatprep.subr.bf16.mxu0 0
    %880 = vmatpush1.bf16.msra.mxu0 0
    %881 = vmatprep.subr.bf16.mxu0 0
    %882 = vmatpush1.bf16.msra.mxu0 0
    %883 = vmatprep.mubr.bf16.mxu0 0
    %884 = vmatmul.mubr.bf16.gmra.mrb[0].mxu0 %v779
    %v885 = vpop.f32.mrb[0].mxu0
    %v886 = vadd.f32 %v801, %v885
    %v887 = vpop.f32.mrb[0].mxu0
    %v888 = vpop.f32.mrb[0].mxu0
    %v889 = vpop.f32.mrb[0].mxu0
    %890 = vdwg.mxu0
    %v891 = vmax.f32 %v886, 0.0
    %v892 = vadd.s32 %v757, 1
    %v893 = vadd.s32 %v892, %v759
    %v894 = vshra.s32 %v893, 16
    %v895 = vand.u32 %v894, 65535
    %v896 = vxor.u32 %v893, %v895
    %v897 = vmul.u32 %v896, 2146121005
    %v898 = vshra.s32 %v897, 15
    %v899 = vand.u32 %v898, 131071
    %v900 = vxor.u32 %v897, %v899
    %v901 = vmul.u32 %v900, 2221647499
    %v902 = vshra.s32 %v901, 16
    %v903 = vand.u32 %v902, 65535
    %v904 = vxor.u32 %v901, %v903
    %v905 = vshra.s32 %v904, 7
    %v906 = vand.u32 %v905, 16777215
    %vm907 = vcmp.ge.s32.totalorder %v906, 3355443
    %v908 = vsel %vm907, 1, 0
    %v909 = vcvt.s32.f32 %v908
    %v910 = vmul.f32 %v909, 1.25
    %v911 = vmul.f32 %v891, %v910
    %v912 = vpack.c.bf16 %v911, %v911
    %v913 = vld [vmem:[#allocation10] sm:$0xf]
    %v914 = vld [vmem:[#allocation10 + $0x4] sm:$0xf]
    %v915 = vld [vmem:[#allocation10 + $0x8] sm:$0xf]
    %v916 = vld [vmem:[#allocation10 + $0xc] sm:$0xf]
    %v917 = vld [vmem:[#allocation10 + $0x10] sm:$0xf]
    %v918 = vld [vmem:[#allocation10 + $0x14] sm:$0xf]
    %v919 = vld [vmem:[#allocation10 + $0x18] sm:$0xf]
    %v920 = vld [vmem:[#allocation10 + $0x1c] sm:$0xf]
    %v921 = vld [vmem:[#allocation10 + $0x20] sm:$0xf]
    %v922 = vld [vmem:[#allocation10 + $0x24] sm:$0xf]
    %v923 = vld [vmem:[#allocation10 + $0x28] sm:$0xf]
    %v924 = vld [vmem:[#allocation10 + $0x2c] sm:$0xf]
    %v925 = vld [vmem:[#allocation10 + $0x30] sm:$0xf]
    %v926 = vld [vmem:[#allocation10 + $0x34] sm:$0xf]
    %v927 = vld [vmem:[#allocation10 + $0x38] sm:$0xf]
    %v928 = vld [vmem:[#allocation10 + $0x3c] sm:$0xf]
    %v929 = vld [vmem:[%s7] sm:$0x1]
    %v931 = vlaneseq
    %v932 = vshrl.u32 %v931, 7
    %v933 = vsub.s32 0, %v932
    %v934 = vrot.slane %v929, %v933
    %v952 = vunpack.c.l.b16 %v913
    %v953 = vunpack.c.l.b16 %v914
    %v954 = vunpack.c.l.b16 %v915
    %v955 = vunpack.c.l.b16 %v916
    %v956 = vunpack.c.l.b16 %v917
    %v957 = vunpack.c.l.b16 %v918
    %v958 = vunpack.c.l.b16 %v919
    %v959 = vunpack.c.l.b16 %v920
    %v960 = vunpack.c.l.b16 %v921
    %v961 = vunpack.c.l.b16 %v922
    %v962 = vunpack.c.l.b16 %v923
    %v963 = vunpack.c.l.b16 %v924
    %v964 = vunpack.c.l.b16 %v925
    %v965 = vunpack.c.l.b16 %v926
    %v966 = vunpack.c.l.b16 %v927
    %v967 = vunpack.c.l.b16 %v928
    %v968 = vpack.c.b16 %v953, %v952
    %v969 = vpack.c.b16 %v955, %v954
    %v970 = vpack.c.b16 %v957, %v956
    %v971 = vpack.c.b16 %v959, %v958
    %v972 = vpack.c.b16 %v961, %v960
    %v973 = vpack.c.b16 %v963, %v962
    %v974 = vpack.c.b16 %v965, %v964
    %v975 = vpack.c.b16 %v967, %v966
    %984 = vmatprep.subr.bf16.mxu0 0
    %985 = vmatpush1.bf16.msra.mxu0 %v968
    %986 = vmatprep.subr.bf16.mxu0 0
    %987 = vmatpush1.bf16.msra.mxu0 %v969
    %988 = vmatprep.subr.bf16.mxu0 0
    %989 = vmatpush1.bf16.msra.mxu0 %v970
    %990 = vmatprep.subr.bf16.mxu0 0
    %991 = vmatpush1.bf16.msra.mxu0 %v971
    %992 = vmatprep.subr.bf16.mxu0 0
    %993 = vmatpush1.bf16.msra.mxu0 %v972
    %994 = vmatprep.subr.bf16.mxu0 0
    %995 = vmatpush1.bf16.msra.mxu0 %v973
    %996 = vmatprep.subr.bf16.mxu0 0
    %997 = vmatpush1.bf16.msra.mxu0 %v974
    %998 = vmatprep.subr.bf16.mxu0 0
    %999 = vmatpush1.bf16.msra.mxu0 %v975
    %1000 = vmatprep.subr.bf16.mxu0 0
    %1001 = vmatpush1.bf16.msra.mxu0 0
    %1002 = vmatprep.subr.bf16.mxu0 0
    %1003 = vmatpush1.bf16.msra.mxu0 0
    %1004 = vmatprep.subr.bf16.mxu0 0
    %1005 = vmatpush1.bf16.msra.mxu0 0
    %1006 = vmatprep.subr.bf16.mxu0 0
    %1007 = vmatpush1.bf16.msra.mxu0 0
    %1008 = vmatprep.subr.bf16.mxu0 0
    %1009 = vmatpush1.bf16.msra.mxu0 0
    %1010 = vmatprep.subr.bf16.mxu0 0
    %1011 = vmatpush1.bf16.msra.mxu0 0
    %1012 = vmatprep.subr.bf16.mxu0 0
    %1013 = vmatpush1.bf16.msra.mxu0 0
    %1014 = vmatprep.subr.bf16.mxu0 0
    %1015 = vmatpush1.bf16.msra.mxu0 0
    %1016 = vmatprep.mubr.bf16.mxu0 0
    %1017 = vmatmul.mubr.bf16.gmra.mrb[0].mxu0 %v912
    %v1018 = vpop.f32.mrb[0].mxu0
    %v1019 = vadd.f32 %v934, %v1018
    %v1020 = vpop.f32.mrb[0].mxu0
    %v1021 = vpop.f32.mrb[0].mxu0
    %v1022 = vpop.f32.mrb[0].mxu0
    %1023 = vdwg.mxu0
    %v1024 = vmax.f32 %v1019, 0.0
    %v1025 = vadd.s32 %v757, 2
    %v1026 = vadd.s32 %v1025, %v759
    %v1027 = vshra.s32 %v1026, 16
    %v1028 = vand.u32 %v1027, 65535
    %v1029 = vxor.u32 %v1026, %v1028
    %v1030 = vmul.u32 %v1029, 2146121005
    %v1031 = vshra.s32 %v1030, 15
    %v1032 = vand.u32 %v1031, 131071
    %v1033 = vxor.u32 %v1030, %v1032
    %v1034 = vmul.u32 %v1033, 2221647499
    %v1035 = vshra.s32 %v1034, 16
    %v1036 = vand.u32 %v1035, 65535
    %v1037 = vxor.u32 %v1034, %v1036
    %v1038 = vshra.s32 %v1037, 7
    %v1039 = vand.u32 %v1038, 16777215
    %vm1040 = vcmp.ge.s32.totalorder %v1039, 3355443
    %v1041 = vsel %vm1040, 1, 0
    %v1042 = vcvt.s32.f32 %v1041
    %v1043 = vmul.f32 %v1042, 1.25
    %v1044 = vmul.f32 %v1024, %v1043
    %v1045 = vpack.c.bf16 %v1044, %v1044
    %v1046 = vld [vmem:[#allocation12] sm:$0xf]
    %v1047 = vld [vmem:[#allocation12 + $0x4] sm:$0xf]
    %v1048 = vld [vmem:[#allocation12 + $0x8] sm:$0xf]
    %v1049 = vld [vmem:[#allocation12 + $0xc] sm:$0xf]
    %v1050 = vld [vmem:[#allocation12 + $0x10] sm:$0xf]
    %v1051 = vld [vmem:[#allocation12 + $0x14] sm:$0xf]
    %v1052 = vld [vmem:[#allocation12 + $0x18] sm:$0xf]
    %v1053 = vld [vmem:[#allocation12 + $0x1c] sm:$0xf]
    %v1054 = vld [vmem:[#allocation12 + $0x20] sm:$0xf]
    %v1055 = vld [vmem:[#allocation12 + $0x24] sm:$0xf]
    %v1056 = vld [vmem:[#allocation12 + $0x28] sm:$0xf]
    %v1057 = vld [vmem:[#allocation12 + $0x2c] sm:$0xf]
    %v1058 = vld [vmem:[#allocation12 + $0x30] sm:$0xf]
    %v1059 = vld [vmem:[#allocation12 + $0x34] sm:$0xf]
    %v1060 = vld [vmem:[#allocation12 + $0x38] sm:$0xf]
    %v1061 = vld [vmem:[#allocation12 + $0x3c] sm:$0xf]
    %v1062 = vld [vmem:[%s9] sm:$0x1]
    %v1064 = vlaneseq
    %v1065 = vshrl.u32 %v1064, 7
    %v1066 = vsub.s32 0, %v1065
    %v1067 = vrot.slane %v1062, %v1066
    %v1085 = vunpack.c.l.b16 %v1046
    %v1086 = vunpack.c.l.b16 %v1047
    %v1087 = vunpack.c.l.b16 %v1048
    %v1088 = vunpack.c.l.b16 %v1049
    %v1089 = vunpack.c.l.b16 %v1050
    %v1090 = vunpack.c.l.b16 %v1051
    %v1091 = vunpack.c.l.b16 %v1052
    %v1092 = vunpack.c.l.b16 %v1053
    %v1093 = vunpack.c.l.b16 %v1054
    %v1094 = vunpack.c.l.b16 %v1055
    %v1095 = vunpack.c.l.b16 %v1056
    %v1096 = vunpack.c.l.b16 %v1057
    %v1097 = vunpack.c.l.b16 %v1058
    %v1098 = vunpack.c.l.b16 %v1059
    %v1099 = vunpack.c.l.b16 %v1060
    %v1100 = vunpack.c.l.b16 %v1061
    %v1101 = vpack.c.b16 %v1086, %v1085
    %v1102 = vpack.c.b16 %v1088, %v1087
    %v1103 = vpack.c.b16 %v1090, %v1089
    %v1104 = vpack.c.b16 %v1092, %v1091
    %v1105 = vpack.c.b16 %v1094, %v1093
    %v1106 = vpack.c.b16 %v1096, %v1095
    %v1107 = vpack.c.b16 %v1098, %v1097
    %v1108 = vpack.c.b16 %v1100, %v1099
    %1117 = vmatprep.subr.bf16.mxu0 0
    %1118 = vmatpush1.bf16.msra.mxu0 %v1101
    %1119 = vmatprep.subr.bf16.mxu0 0
    %1120 = vmatpush1.bf16.msra.mxu0 %v1102
    %1121 = vmatprep.subr.bf16.mxu0 0
    %1122 = vmatpush1.bf16.msra.mxu0 %v1103
    %1123 = vmatprep.subr.bf16.mxu0 0
    %1124 = vmatpush1.bf16.msra.mxu0 %v1104
    %1125 = vmatprep.subr.bf16.mxu0 0
    %1126 = vmatpush1.bf16.msra.mxu0 %v1105
    %1127 = vmatprep.subr.bf16.mxu0 0
    %1128 = vmatpush1.bf16.msra.mxu0 %v1106
    %1129 = vmatprep.subr.bf16.mxu0 0
    %1130 = vmatpush1.bf16.msra.mxu0 %v1107
    %1131 = vmatprep.subr.bf16.mxu0 0
    %1132 = vmatpush1.bf16.msra.mxu0 %v1108
    %1133 = vmatprep.subr.bf16.mxu0 0
    %1134 = vmatpush1.bf16.msra.mxu0 0
    %1135 = vmatprep.subr.bf16.mxu0 0
    %1136 = vmatpush1.bf16.msra.mxu0 0
    %1137 = vmatprep.subr.bf16.mxu0 0
    %1138 = vmatpush1.bf16.msra.mxu0 0
    %1139 = vmatprep.subr.bf16.mxu0 0
    %1140 = vmatpush1.bf16.msra.mxu0 0
    %1141 = vmatprep.subr.bf16.mxu0 0
    %1142 = vmatpush1.bf16.msra.mxu0 0
    %1143 = vmatprep.subr.bf16.mxu0 0
    %1144 = vmatpush1.bf16.msra.mxu0 0
    %1145 = vmatprep.subr.bf16.mxu0 0
    %1146 = vmatpush1.bf16.msra.mxu0 0
    %1147 = vmatprep.subr.bf16.mxu0 0
    %1148 = vmatpush1.bf16.msra.mxu0 0
    %1149 = vmatprep.mubr.bf16.mxu0 0
    %1150 = vmatmul.mubr.bf16.gmra.mrb[0].mxu0 %v1045
    %v1151 = vpop.f32.mrb[0].mxu0
    %v1152 = vadd.f32 %v1067, %v1151
    %v1153 = vpop.f32.mrb[0].mxu0
    %v1154 = vpop.f32.mrb[0].mxu0
    %v1155 = vpop.f32.mrb[0].mxu0
    %1156 = vdwg.mxu0
    %1157 = vst [vmem:[#allocation13] sm:$0xff] %v1152
    // Predicated region
    $region58: #{tpu_custom_call.1} parent=1 // pred_check
      _
    $region59: #{tpu_custom_call.1} parent=1 // pred_check_branch
      %1159 = sbr.rel (0) target = $region61
    $region60: #{tpu_custom_call.1} parent=1 // pred_region
      %s1161 = ssub.s32 128, 128
      %1162 = vsyncadd [#allocation6], %s1161
      %s1164 = sshll.u32 [#allocation13], 4
      %s1165 = int_to_ptr.vmem [resolvable:$true] %s1164
      %1167 = dma.vmem_to_hbm [thread:$0]  %s1165, 128, %s10, [#allocation6]
    $region61: #{tpu_custom_call.1} parent=1 // pred_fallthru
      _
    // Predicated region
    $region62: #{tpu_custom_call.1} parent=1 // pred_check
      _
    $region63: #{tpu_custom_call.1} parent=1 // pred_check_branch
      %1169 = sbr.rel (0) target = $region65
    $region64: #{tpu_custom_call.1} parent=1 // pred_region
      %1170 = dma.done [#allocation6], 128
    $region65: #{tpu_custom_call.1} parent=1 // pred_fallthru
      _
    %1171 = vsyncpa [#allocation5], 1
    %1172 = vsyncpa [#allocation8], 1
    %1173 = vsyncpa [#allocation11], 1
    %1174 = vsyncpa [#allocation6], 1

</llo_original>
